<compile_context>
chip_gen: v7x
topology: tpu7x:2x2x1
jax: 0.10.0
libtpu: 0.0.40
codegen_flags: <defaults>
</compile_context>

<pallas_src>
import jax
import jax.numpy as jnp
from jax.experimental import pallas as pl
from jax.experimental.pallas import tpu as pltpu

LANE = 128
BF16_SUBLANE = 16   # sublane quantum that covers both f32 (8) and bf16 (16)


def _round_up(x, m):
    return ((x + m - 1) // m) * m


def _silu_f32(v):
    # SiLU(v) = v * sigmoid(v), with sigmoid(v) = 0.5*(tanh(0.5 v) + 1):
    # a single EUP transcendental per element instead of exp + divide.
    return v * (0.5 * jnp.tanh(0.5 * v) + 0.5)


def encoder_kernel(x_ref,
                   w0_ref, b0_ref,
                   w1_ref, b1_ref,
                   w2_ref, b2_ref,
                   w3_ref, b3_ref,
                   w4_ref, b4_ref,
                   w5_ref, b5_ref,
                   out_ref):
    act_dt = w1_ref.dtype   # compute dtype of the wide middle layers (bf16)

    def layer(h, w_ref, b_ref):
        # MXU matmul with f32 accumulation; bias add in f32.
        return jnp.dot(h, w_ref[...],
                       preferred_element_type=jnp.float32) + b_ref[...]

    def layer_silu(h, w_ref, b_ref):
        # SiLU stays in f32 (v5e has no bf16 VPU/EUP); the stored activation is
        # bf16 -> halves activation vld/vst bytes and vreg/VMEM pressure.
        return _silu_f32(layer(h, w_ref, b_ref)).astype(act_dt)

    h = x_ref[...]                      # [bt, in_features]  float32
    h = layer_silu(h, w0_ref, b0_ref)   # inp   (w0 kept f32: K=5, exact input path)
    h = layer_silu(h, w1_ref, b1_ref)   # fc1   (+ dropout p=0.0 -> identity)
    h = layer_silu(h, w2_ref, b2_ref)   # fc2   (+ dropout p=0.0 -> identity)
    h = layer_silu(h, w3_ref, b3_ref)   # fc3   (+ dropout p=0.0 -> identity)
    h = layer_silu(h, w4_ref, b4_ref)   # fc4
    out_ref[...] = layer(h, w5_ref, b5_ref).astype(out_ref.dtype)   # fc_latent


def prepare_encoder_params(params, *, compute_dtype=jnp.bfloat16,
                           first_layer_f32=True):
    """Zero-pad every layer's output width up to a multiple of 128 lanes, cast
    the wide middle layers to the MXU compute dtype (layer 0 optionally stays
    f32: K=5 is MXU-negligible and keeps the f32 input path exact).  Padding is
    numerically exact: padded weight rows/cols and bias lanes are zero and
    SiLU(0)=0, so padded activation lanes stay zero through the whole net."""
    padded = []
    prev_out_pad = params[0][0].shape[0]   # real input feature count (K of layer 0)
    for idx, (w, b) in enumerate(params):
        fan_in, fan_out = w.shape
        out_pad = max(LANE, _round_up(fan_out, LANE))
        w_p = jnp.zeros((prev_out_pad, out_pad), jnp.float32)
        w_p = w_p.at[:fan_in, :fan_out].set(w.astype(jnp.float32))
        b_p = jnp.zeros((1, out_pad), jnp.float32)
        b_p = b_p.at[:, :fan_out].set(b.reshape(1, -1).astype(jnp.float32))
        w_dt = jnp.float32 if (idx == 0 and first_layer_f32) else compute_dtype
        padded.append((w_p.astype(w_dt), b_p))   # bias stays f32
        prev_out_pad = out_pad
    latent_dim = params[-1][0].shape[1]
    return padded, latent_dim


def _pick_batch_tile(batch, batch_tile):
    """Row tile + padded batch.  Tiny batches pad only to the 16-row sublane
    quantum (no 128-row inflation).  Large batches use big, 128-aligned tiles,
    with >=2 grid steps whenever there is enough work so v7x's two TensorCores
    both get a share of the 'parallel' axis."""
    if batch < LANE:
        bt = _round_up(max(batch, 1), BF16_SUBLANE)
        return bt, bt
    bt = min(batch_tile, _round_up(batch, LANE))
    bt = max(LANE, _round_up(bt, LANE))
    padded_batch = _round_up(batch, bt)
    if padded_batch // bt < 2 and padded_batch >= 2 * LANE:
        bt = max(LANE, (padded_batch // 2) // LANE * LANE)
        padded_batch = _round_up(batch, bt)
    return bt, padded_batch


def encoder_forward(x, padded_params, latent_dim, *, batch_tile=512,
                    out_dtype=jnp.bfloat16, single_buffer_weights=False,
                    interpret=False):
    """x: [batch, input_size] float32.  padded_params: output of
    prepare_encoder_params.  Returns [batch, latent_dim] float32."""
    batch, in_features = x.shape
    out_pad = padded_params[-1][0].shape[1]
    bt, padded_batch = _pick_batch_tile(batch, batch_tile)

    x = x.astype(jnp.float32)
    if padded_batch != batch:
        x = jnp.pad(x, ((0, padded_batch - batch), (0, 0)))

    grid = (padded_batch // bt,)
    in_specs = [pl.BlockSpec((bt, in_features), lambda i: (i, 0))]
    flat_args = [x]

    if single_buffer_weights:
        # Grid-invariant weights gain nothing from double buffering; a single
        # buffer halves their VMEM residency (useful for large n on v7x).
        def w_spec(shape):
            return pl.BlockSpec(shape, lambda i: (0, 0),
                                pipeline_mode=pl.Buffered(1))
    else:
        def w_spec(shape):
            return pl.BlockSpec(shape, lambda i: (0, 0))

    for (w, b) in padded_params:
        # Grid-invariant blocks (constant index_map): Pallas skips the re-DMA
        # across grid steps, so weights/biases are effectively VMEM-resident.
        in_specs.append(w_spec(w.shape))
        in_specs.append(w_spec(b.shape))
        flat_args.extend([w, b])

    out_spec = pl.BlockSpec((bt, out_pad), lambda i: (i, 0))

    # VMEM budget guard (mostly for large n on v7x's 64 MiB VMEM): only raise
    # the scoped limit when the all-resident design actually needs it.
    param_bytes = sum(int(w.size) * w.dtype.itemsize + int(b.size) * b.dtype.itemsize
                      for (w, b) in padded_params)
    widest = max(w.shape[1] for (w, _) in padded_params)
    act_bytes = 4 * bt * widest * 4
    io_bytes = 2 * bt * (in_features + out_pad) * 4
    needed = 2 * param_bytes + act_bytes + io_bytes
    vmem_limit = None
    if needed > 24 * 1024 * 1024:
        vmem_limit = min(int(needed * 3 // 2), 100 * 1024 * 1024)
    # TODO(synk): for very large n (all-resident bf16 weights ~80*n^2 bytes,
    # past roughly n~900 on v7x) switch to a layer-looped / K-tiled
    # pltpu.emit_pipeline instead of keeping every layer VMEM-resident.

    out_padded = pl.pallas_call(
        encoder_kernel,
        out_shape=jax.ShapeDtypeStruct((padded_batch, out_pad), out_dtype),
        grid_spec=pltpu.PrefetchScalarGridSpec(
            num_scalar_prefetch=0,
            grid=grid,
            in_specs=in_specs,
            out_specs=out_spec,
        ),
        compiler_params=pltpu.CompilerParams(
            dimension_semantics=("parallel",),   # shards steps over v7x's 2 TCs
            vmem_limit_bytes=vmem_limit),
        interpret=interpret,
    )(*flat_args)

    # Lane-dense padded bf16 store inside the kernel; free slice + upcast here.
    return out_padded[:batch, :latent_dim].astype(jnp.float32)


def make_encoder(params, *, batch_tile=512, compute_dtype=jnp.bfloat16,
                 out_dtype=jnp.bfloat16, single_buffer_weights=False,
                 interpret=False):
    """Pad/cast the parameters ONCE (off the hot path) and return a jitted
    forward function."""
    padded_params, latent_dim = prepare_encoder_params(
        params, compute_dtype=compute_dtype)

    @jax.jit
    def forward(x):
        return encoder_forward(x, padded_params, latent_dim,
                               batch_tile=batch_tile, out_dtype=out_dtype,
                               single_buffer_weights=single_buffer_weights,
                               interpret=interpret)

    return forward


def init_encoder_params(key, n, input_size):
    """PyTorch nn.Linear default init: U(-1/sqrt(fan_in), 1/sqrt(fan_in)).
    Weights stored transposed vs PyTorch, i.e. [fan_in, fan_out]."""
    dims = [input_size, 5 * n, 4 * n, 3 * n, 2 * n, 1 * n, 4]
    params = []
    for fan_in, fan_out in zip(dims[:-1], dims[1:]):
        key, kw, kb = jax.random.split(key, 3)
        bound = 1.0 / jnp.sqrt(jnp.float32(fan_in))
        w = jax.random.uniform(kw, (fan_in, fan_out), jnp.float32,
                               minval=-bound, maxval=bound)
        b = jax.random.uniform(kb, (1, fan_out), jnp.float32,
                               minval=-bound, maxval=bound)
        params.append((w, b))
    return params


def encoder_reference(x, params):
    """Plain-JAX f32 reference for the same forward pass."""
    h = x
    for i, (w, b) in enumerate(params):
        h = h @ w + b
        if i < len(params) - 1:
            h = h * jax.nn.sigmoid(h)   # SiLU; dropout p=0.0 is identity
    return h


if __name__ == "__main__":
    key = jax.random.PRNGKey(0)
    n = 32            # hidden multiplier -> layer widths: 5,160,128,96,64,32,4
    input_size = 5    # matches dataset[:, :5]
    batch = 16

    key, kx = jax.random.split(key)
    x = jax.random.normal(kx, (batch, input_size), jnp.float32)
    params = init_encoder_params(key, n, input_size)

    encoder = make_encoder(params)                 # one-time prep + jit
    latent = jax.block_until_ready(encoder(x))

    ref = encoder_reference(x, params)
    assert latent.shape == (batch, 4), latent.shape
    # bf16 MXU inputs / bf16 activations -> loosened tolerance vs f32 reference.
    err = float(jnp.max(jnp.abs(latent - ref)))
    assert jnp.allclose(latent, ref, atol=5e-2, rtol=5e-2), err

    print("KERNEL_OK")
</pallas_src>

<mosaic_0001>
module attributes {stable_mosaic.version = 11 : i64} {
  func.func @encoder_kernel(%arg0: i32, %arg1: memref<16x5xf32, #tpu.memory_space<vmem>>, %arg2: memref<5x256xf32, #tpu.memory_space<vmem>>, %arg3: memref<1x256xf32, #tpu.memory_space<vmem>>, %arg4: memref<256x128xbf16, #tpu.memory_space<vmem>>, %arg5: memref<1x128xf32, #tpu.memory_space<vmem>>, %arg6: memref<128x128xbf16, #tpu.memory_space<vmem>>, %arg7: memref<1x128xf32, #tpu.memory_space<vmem>>, %arg8: memref<128x128xbf16, #tpu.memory_space<vmem>>, %arg9: memref<1x128xf32, #tpu.memory_space<vmem>>, %arg10: memref<128x128xbf16, #tpu.memory_space<vmem>>, %arg11: memref<1x128xf32, #tpu.memory_space<vmem>>, %arg12: memref<128x128xbf16, #tpu.memory_space<vmem>>, %arg13: memref<1x128xf32, #tpu.memory_space<vmem>>, %arg14: memref<16x128xbf16, #tpu.memory_space<vmem>>) attributes {dimension_semantics = [#tpu.dimension_semantics<parallel>], iteration_bounds = array<i64: 1>, scalar_prefetch = 0 : i64, scratch_operands = 0 : i64, tpu.core_type = #tpu.core_type<tc>, window_params = [{transform_indices = @transform_0, window_bounds = array<i64: 16, 5>}, {pipeline_mode = #tpu.pipeline_mode<synchronous>, transform_indices = @transform_1, window_bounds = array<i64: 5, 256>}, {pipeline_mode = #tpu.pipeline_mode<synchronous>, transform_indices = @transform_2, window_bounds = array<i64: 1, 256>}, {pipeline_mode = #tpu.pipeline_mode<synchronous>, transform_indices = @transform_3, window_bounds = array<i64: 256, 128>}, {pipeline_mode = #tpu.pipeline_mode<synchronous>, transform_indices = @transform_4, window_bounds = array<i64: 1, 128>}, {pipeline_mode = #tpu.pipeline_mode<synchronous>, transform_indices = @transform_5, window_bounds = array<i64: 128, 128>}, {pipeline_mode = #tpu.pipeline_mode<synchronous>, transform_indices = @transform_6, window_bounds = array<i64: 1, 128>}, {pipeline_mode = #tpu.pipeline_mode<synchronous>, transform_indices = @transform_7, window_bounds = array<i64: 128, 128>}, {pipeline_mode = #tpu.pipeline_mode<synchronous>, transform_indices = @transform_8, window_bounds = array<i64: 1, 128>}, {pipeline_mode = #tpu.pipeline_mode<synchronous>, transform_indices = @transform_9, window_bounds = array<i64: 128, 128>}, {pipeline_mode = #tpu.pipeline_mode<synchronous>, transform_indices = @transform_10, window_bounds = array<i64: 1, 128>}, {pipeline_mode = #tpu.pipeline_mode<synchronous>, transform_indices = @transform_11, window_bounds = array<i64: 128, 128>}, {pipeline_mode = #tpu.pipeline_mode<synchronous>, transform_indices = @transform_12, window_bounds = array<i64: 1, 128>}, {transform_indices = @transform_13, window_bounds = array<i64: 16, 128>}]} {
    %c0 = arith.constant 0 : index
    %c0_0 = arith.constant 0 : index
    %0 = vector.load %arg1[%c0, %c0_0] : memref<16x5xf32, #tpu.memory_space<vmem>>, vector<16x5xf32>
    %c0_1 = arith.constant 0 : index
    %c0_2 = arith.constant 0 : index
    %1 = vector.load %arg2[%c0_1, %c0_2] : memref<5x256xf32, #tpu.memory_space<vmem>>, vector<5x256xf32>
    %cst = arith.constant dense<0.000000e+00> : vector<16x256xf32>
    %2 = tpu.matmul %0, %1, %cst {dimension_numbers = #tpu.dot_dimension_numbers<[1], [0], [0], [1], [0, 0, 1, 1], [], []>} : vector<16x5xf32>, vector<5x256xf32>, vector<16x256xf32> -> vector<16x256xf32>
    %c0_3 = arith.constant 0 : index
    %c0_4 = arith.constant 0 : index
    %3 = vector.load %arg3[%c0_3, %c0_4] : memref<1x256xf32, #tpu.memory_space<vmem>>, vector<1x256xf32>
    %4 = vector.broadcast %3 : vector<1x256xf32> to vector<16x256xf32>
    %5 = arith.addf %2, %4 : vector<16x256xf32>
    %cst_5 = arith.constant 5.000000e-01 : f32
    %6 = vector.broadcast %cst_5 : f32 to vector<16x256xf32>
    %7 = arith.mulf %6, %5 : vector<16x256xf32>
    %8 = math.tanh %7 : vector<16x256xf32>
    %cst_6 = arith.constant 5.000000e-01 : f32
    %9 = vector.broadcast %cst_6 : f32 to vector<16x256xf32>
    %10 = arith.mulf %9, %8 : vector<16x256xf32>
    %cst_7 = arith.constant 5.000000e-01 : f32
    %11 = vector.broadcast %cst_7 : f32 to vector<16x256xf32>
    %12 = arith.addf %10, %11 : vector<16x256xf32>
    %13 = arith.mulf %5, %12 : vector<16x256xf32>
    %14 = arith.truncf %13 : vector<16x256xf32> to vector<16x256xbf16>
    %c0_8 = arith.constant 0 : index
    %c0_9 = arith.constant 0 : index
    %15 = vector.load %arg4[%c0_8, %c0_9] : memref<256x128xbf16, #tpu.memory_space<vmem>>, vector<256x128xbf16>
    %cst_10 = arith.constant dense<0.000000e+00> : vector<16x128xf32>
    %16 = tpu.matmul %14, %15, %cst_10 {dimension_numbers = #tpu.dot_dimension_numbers<[1], [0], [0], [1], [0, 0, 1, 1], [], []>} : vector<16x256xbf16>, vector<256x128xbf16>, vector<16x128xf32> -> vector<16x128xf32>
    %c0_11 = arith.constant 0 : index
    %c0_12 = arith.constant 0 : index
    %17 = vector.load %arg5[%c0_11, %c0_12] : memref<1x128xf32, #tpu.memory_space<vmem>>, vector<1x128xf32>
    %18 = vector.broadcast %17 : vector<1x128xf32> to vector<16x128xf32>
    %19 = arith.addf %16, %18 : vector<16x128xf32>
    %cst_13 = arith.constant 5.000000e-01 : f32
    %20 = vector.broadcast %cst_13 : f32 to vector<16x128xf32>
    %21 = arith.mulf %20, %19 : vector<16x128xf32>
    %22 = math.tanh %21 : vector<16x128xf32>
    %cst_14 = arith.constant 5.000000e-01 : f32
    %23 = vector.broadcast %cst_14 : f32 to vector<16x128xf32>
    %24 = arith.mulf %23, %22 : vector<16x128xf32>
    %cst_15 = arith.constant 5.000000e-01 : f32
    %25 = vector.broadcast %cst_15 : f32 to vector<16x128xf32>
    %26 = arith.addf %24, %25 : vector<16x128xf32>
    %27 = arith.mulf %19, %26 : vector<16x128xf32>
    %28 = arith.truncf %27 : vector<16x128xf32> to vector<16x128xbf16>
    %c0_16 = arith.constant 0 : index
    %c0_17 = arith.constant 0 : index
    %29 = vector.load %arg6[%c0_16, %c0_17] : memref<128x128xbf16, #tpu.memory_space<vmem>>, vector<128x128xbf16>
    %cst_18 = arith.constant dense<0.000000e+00> : vector<16x128xf32>
    %30 = tpu.matmul %28, %29, %cst_18 {dimension_numbers = #tpu.dot_dimension_numbers<[1], [0], [0], [1], [0, 0, 1, 1], [], []>} : vector<16x128xbf16>, vector<128x128xbf16>, vector<16x128xf32> -> vector<16x128xf32>
    %c0_19 = arith.constant 0 : index
    %c0_20 = arith.constant 0 : index
    %31 = vector.load %arg7[%c0_19, %c0_20] : memref<1x128xf32, #tpu.memory_space<vmem>>, vector<1x128xf32>
    %32 = vector.broadcast %31 : vector<1x128xf32> to vector<16x128xf32>
    %33 = arith.addf %30, %32 : vector<16x128xf32>
    %cst_21 = arith.constant 5.000000e-01 : f32
    %34 = vector.broadcast %cst_21 : f32 to vector<16x128xf32>
    %35 = arith.mulf %34, %33 : vector<16x128xf32>
    %36 = math.tanh %35 : vector<16x128xf32>
    %cst_22 = arith.constant 5.000000e-01 : f32
    %37 = vector.broadcast %cst_22 : f32 to vector<16x128xf32>
    %38 = arith.mulf %37, %36 : vector<16x128xf32>
    %cst_23 = arith.constant 5.000000e-01 : f32
    %39 = vector.broadcast %cst_23 : f32 to vector<16x128xf32>
    %40 = arith.addf %38, %39 : vector<16x128xf32>
    %41 = arith.mulf %33, %40 : vector<16x128xf32>
    %42 = arith.truncf %41 : vector<16x128xf32> to vector<16x128xbf16>
    %c0_24 = arith.constant 0 : index
    %c0_25 = arith.constant 0 : index
    %43 = vector.load %arg8[%c0_24, %c0_25] : memref<128x128xbf16, #tpu.memory_space<vmem>>, vector<128x128xbf16>
    %cst_26 = arith.constant dense<0.000000e+00> : vector<16x128xf32>
    %44 = tpu.matmul %42, %43, %cst_26 {dimension_numbers = #tpu.dot_dimension_numbers<[1], [0], [0], [1], [0, 0, 1, 1], [], []>} : vector<16x128xbf16>, vector<128x128xbf16>, vector<16x128xf32> -> vector<16x128xf32>
    %c0_27 = arith.constant 0 : index
    %c0_28 = arith.constant 0 : index
    %45 = vector.load %arg9[%c0_27, %c0_28] : memref<1x128xf32, #tpu.memory_space<vmem>>, vector<1x128xf32>
    %46 = vector.broadcast %45 : vector<1x128xf32> to vector<16x128xf32>
    %47 = arith.addf %44, %46 : vector<16x128xf32>
    %cst_29 = arith.constant 5.000000e-01 : f32
    %48 = vector.broadcast %cst_29 : f32 to vector<16x128xf32>
    %49 = arith.mulf %48, %47 : vector<16x128xf32>
    %50 = math.tanh %49 : vector<16x128xf32>
    %cst_30 = arith.constant 5.000000e-01 : f32
    %51 = vector.broadcast %cst_30 : f32 to vector<16x128xf32>
    %52 = arith.mulf %51, %50 : vector<16x128xf32>
    %cst_31 = arith.constant 5.000000e-01 : f32
    %53 = vector.broadcast %cst_31 : f32 to vector<16x128xf32>
    %54 = arith.addf %52, %53 : vector<16x128xf32>
    %55 = arith.mulf %47, %54 : vector<16x128xf32>
    %56 = arith.truncf %55 : vector<16x128xf32> to vector<16x128xbf16>
    %c0_32 = arith.constant 0 : index
    %c0_33 = arith.constant 0 : index
    %57 = vector.load %arg10[%c0_32, %c0_33] : memref<128x128xbf16, #tpu.memory_space<vmem>>, vector<128x128xbf16>
    %cst_34 = arith.constant dense<0.000000e+00> : vector<16x128xf32>
    %58 = tpu.matmul %56, %57, %cst_34 {dimension_numbers = #tpu.dot_dimension_numbers<[1], [0], [0], [1], [0, 0, 1, 1], [], []>} : vector<16x128xbf16>, vector<128x128xbf16>, vector<16x128xf32> -> vector<16x128xf32>
    %c0_35 = arith.constant 0 : index
    %c0_36 = arith.constant 0 : index
    %59 = vector.load %arg11[%c0_35, %c0_36] : memref<1x128xf32, #tpu.memory_space<vmem>>, vector<1x128xf32>
    %60 = vector.broadcast %59 : vector<1x128xf32> to vector<16x128xf32>
    %61 = arith.addf %58, %60 : vector<16x128xf32>
    %cst_37 = arith.constant 5.000000e-01 : f32
    %62 = vector.broadcast %cst_37 : f32 to vector<16x128xf32>
    %63 = arith.mulf %62, %61 : vector<16x128xf32>
    %64 = math.tanh %63 : vector<16x128xf32>
    %cst_38 = arith.constant 5.000000e-01 : f32
    %65 = vector.broadcast %cst_38 : f32 to vector<16x128xf32>
    %66 = arith.mulf %65, %64 : vector<16x128xf32>
    %cst_39 = arith.constant 5.000000e-01 : f32
    %67 = vector.broadcast %cst_39 : f32 to vector<16x128xf32>
    %68 = arith.addf %66, %67 : vector<16x128xf32>
    %69 = arith.mulf %61, %68 : vector<16x128xf32>
    %70 = arith.truncf %69 : vector<16x128xf32> to vector<16x128xbf16>
    %c0_40 = arith.constant 0 : index
    %c0_41 = arith.constant 0 : index
    %71 = vector.load %arg12[%c0_40, %c0_41] : memref<128x128xbf16, #tpu.memory_space<vmem>>, vector<128x128xbf16>
    %cst_42 = arith.constant dense<0.000000e+00> : vector<16x128xf32>
    %72 = tpu.matmul %70, %71, %cst_42 {dimension_numbers = #tpu.dot_dimension_numbers<[1], [0], [0], [1], [0, 0, 1, 1], [], []>} : vector<16x128xbf16>, vector<128x128xbf16>, vector<16x128xf32> -> vector<16x128xf32>
    %c0_43 = arith.constant 0 : index
    %c0_44 = arith.constant 0 : index
    %73 = vector.load %arg13[%c0_43, %c0_44] : memref<1x128xf32, #tpu.memory_space<vmem>>, vector<1x128xf32>
    %74 = vector.broadcast %73 : vector<1x128xf32> to vector<16x128xf32>
    %75 = arith.addf %72, %74 : vector<16x128xf32>
    %76 = arith.truncf %75 : vector<16x128xf32> to vector<16x128xbf16>
    %c0_45 = arith.constant 0 : index
    %c0_46 = arith.constant 0 : index
    %77 = vector.load %arg14[%c0_45, %c0_46] : memref<16x128xbf16, #tpu.memory_space<vmem>>, vector<16x128xbf16>
    tpu.vector_store %arg14[%c0_45, %c0_46], %76 {strides = array<i32>} : memref<16x128xbf16, #tpu.memory_space<vmem>>, vector<16x128xbf16>,
    return
  }
  func.func @transform_0(%arg0: i32) -> (i32, i32) {
    %c0_i32 = arith.constant 0 : i32
    %c0_i32_0 = arith.constant 0 : i32
    return %arg0, %c0_i32 : i32, i32
  }
  func.func @transform_1(%arg0: i32) -> (i32, i32) {
    %c0_i32 = arith.constant 0 : i32
    %c0_i32_0 = arith.constant 0 : i32
    %c0_i32_1 = arith.constant 0 : i32
    return %c0_i32, %c0_i32_0 : i32, i32
  }
  func.func @transform_2(%arg0: i32) -> (i32, i32) {
    %c0_i32 = arith.constant 0 : i32
    %c0_i32_0 = arith.constant 0 : i32
    %c0_i32_1 = arith.constant 0 : i32
    return %c0_i32, %c0_i32_0 : i32, i32
  }
  func.func @transform_3(%arg0: i32) -> (i32, i32) {
    %c0_i32 = arith.constant 0 : i32
    %c0_i32_0 = arith.constant 0 : i32
    %c0_i32_1 = arith.constant 0 : i32
    return %c0_i32, %c0_i32_0 : i32, i32
  }
  func.func @transform_4(%arg0: i32) -> (i32, i32) {
    %c0_i32 = arith.constant 0 : i32
    %c0_i32_0 = arith.constant 0 : i32
    %c0_i32_1 = arith.constant 0 : i32
    return %c0_i32, %c0_i32_0 : i32, i32
  }
  func.func @transform_5(%arg0: i32) -> (i32, i32) {
    %c0_i32 = arith.constant 0 : i32
    %c0_i32_0 = arith.constant 0 : i32
    %c0_i32_1 = arith.constant 0 : i32
    return %c0_i32, %c0_i32_0 : i32, i32
  }
  func.func @transform_6(%arg0: i32) -> (i32, i32) {
    %c0_i32 = arith.constant 0 : i32
    %c0_i32_0 = arith.constant 0 : i32
    %c0_i32_1 = arith.constant 0 : i32
    return %c0_i32, %c0_i32_0 : i32, i32
  }
  func.func @transform_7(%arg0: i32) -> (i32, i32) {
    %c0_i32 = arith.constant 0 : i32
    %c0_i32_0 = arith.constant 0 : i32
    %c0_i32_1 = arith.constant 0 : i32
    return %c0_i32, %c0_i32_0 : i32, i32
  }
  func.func @transform_8(%arg0: i32) -> (i32, i32) {
    %c0_i32 = arith.constant 0 : i32
    %c0_i32_0 = arith.constant 0 : i32
    %c0_i32_1 = arith.constant 0 : i32
    return %c0_i32, %c0_i32_0 : i32, i32
  }
  func.func @transform_9(%arg0: i32) -> (i32, i32) {
    %c0_i32 = arith.constant 0 : i32
    %c0_i32_0 = arith.constant 0 : i32
    %c0_i32_1 = arith.constant 0 : i32
    return %c0_i32, %c0_i32_0 : i32, i32
  }
  func.func @transform_10(%arg0: i32) -> (i32, i32) {
    %c0_i32 = arith.constant 0 : i32
    %c0_i32_0 = arith.constant 0 : i32
    %c0_i32_1 = arith.constant 0 : i32
    return %c0_i32, %c0_i32_0 : i32, i32
  }
  func.func @transform_11(%arg0: i32) -> (i32, i32) {
    %c0_i32 = arith.constant 0 : i32
    %c0_i32_0 = arith.constant 0 : i32
    %c0_i32_1 = arith.constant 0 : i32
    return %c0_i32, %c0_i32_0 : i32, i32
  }
  func.func @transform_12(%arg0: i32) -> (i32, i32) {
    %c0_i32 = arith.constant 0 : i32
    %c0_i32_0 = arith.constant 0 : i32
    %c0_i32_1 = arith.constant 0 : i32
    return %c0_i32, %c0_i32_0 : i32, i32
  }
  func.func @transform_13(%arg0: i32) -> (i32, i32) {
    %c0_i32 = arith.constant 0 : i32
    %c0_i32_0 = arith.constant 0 : i32
    return %arg0, %c0_i32 : i32, i32
  }
}

</mosaic_0001>

<llo_original>
// kernel: forward.1
$region0: #{forward.1}
  #allocation0 [shape = 'u32[]', space=smem, size = 0x4, offset = 0x4, fixed_abs, tag = 'smem constant byte address 0x4 - core index']
  #allocation1 [shape = 'u32[144,128]{1,0:T(1,128)}', space=vmem, size = 0x12000, scoped, tag = 'internal scratch']
  %s0 = inlined_call_operand.vmem [shape: f32[16,5], index: 0, kind: input, shape index: {}]
  %s1 = inlined_call_operand.vmem [shape: f32[5,256], index: 1, kind: input, shape index: {}]
  %s2 = inlined_call_operand.vmem [shape: f32[1,256], index: 2, kind: input, shape index: {}]
  %s3 = inlined_call_operand.hbm [shape: bf16[256,128], index: 3, kind: input, shape index: {}]
  %s4 = inlined_call_operand.vmem [shape: f32[1,128], index: 4, kind: input, shape index: {}]
  %s5 = inlined_call_operand.hbm [shape: bf16[128,128], index: 5, kind: input, shape index: {}]
  %s6 = inlined_call_operand.vmem [shape: f32[1,128], index: 6, kind: input, shape index: {}]
  %s7 = inlined_call_operand.hbm [shape: bf16[128,128], index: 7, kind: input, shape index: {}]
  %s8 = inlined_call_operand.vmem [shape: f32[1,128], index: 8, kind: input, shape index: {}]
  %s9 = inlined_call_operand.hbm [shape: bf16[128,128], index: 9, kind: input, shape index: {}]
  %s10 = inlined_call_operand.vmem [shape: f32[1,128], index: 10, kind: input, shape index: {}]
  %s11 = inlined_call_operand.vmem [shape: bf16[128,128], index: 11, kind: input, shape index: {}]
  %s12 = inlined_call_operand.vmem [shape: f32[1,128], index: 12, kind: input, shape index: {}]
  %s13 = inlined_call_operand.vmem [shape: bf16[16,128], index: 13, kind: output, shape index: {}]
  %s14 = sld [smem:[#allocation0]]
  $region78: #{forward.1} parent=0
    _
  %s16 = ssub.s32 1, %s14
  %s17 = scalar_select 0, %s16, %s14
  $region1: #{forward.1} parent=0
    #allocation2 [shape = 'u8[65536]{0}', space=vmem, size = 0x10000, scoped, tag = 'input window, operand 3, single buffered']
    #allocation3 [shape = 's32[1]{0}', space=sflag, size = 0x4, scoped, tag = 'scoped memory for forward.1']
    #allocation4 [shape = 'u8[32768]{0}', space=vmem, size = 0x8000, scoped, tag = 'input window, operand 5, single buffered']
    #allocation5 [shape = 's32[1]{0}', space=sflag, size = 0x4, scoped, tag = 'scoped memory for forward.1']
    #allocation6 [shape = 'u8[32768]{0}', space=vmem, size = 0x8000, scoped, tag = 'input window, operand 7, single buffered']
    #allocation7 [shape = 'u8[32768]{0}', space=vmem, size = 0x8000, scoped, tag = 'input window, operand 9, single buffered']
    #allocation8 [shape = 's32[1]{0}', space=sflag, size = 0x4, scoped, tag = 'scoped memory for forward.1']
    %18 = vsyncpa [#allocation3], 0
    %19 = vsyncpa [#allocation5], 0
    %20 = vsyncpa [#allocation8], 0
    // Predicated region
    $region2: #{forward.1} parent=1 // pred_check
      _
    $region3: #{forward.1} parent=1 // pred_check_branch
      %22 = sbr.rel (0) target = $region5
    $region4: #{forward.1} parent=1 // pred_region
      _
    $region5: #{forward.1} parent=1 // pred_fallthru
      _
    // Predicated region
    $region6: #{forward.1} parent=1 // pred_check
      _
    $region7: #{forward.1} parent=1 // pred_check_branch
      %24 = sbr.rel (0) target = $region9
    $region8: #{forward.1} parent=1 // pred_region
      _
    $region9: #{forward.1} parent=1 // pred_fallthru
      _
    // Predicated region
    $region10: #{forward.1} parent=1 // pred_check
      _
    $region11: #{forward.1} parent=1 // pred_check_branch
      %26 = sbr.rel (0) target = $region13
    $region12: #{forward.1} parent=1 // pred_region
      _
    $region13: #{forward.1} parent=1 // pred_fallthru
      _
    // Predicated region
    $region14: #{forward.1} parent=1 // pred_check
      _
    $region15: #{forward.1} parent=1 // pred_check_branch
      %28 = sbr.rel (0) target = $region17
    $region16: #{forward.1} parent=1 // pred_region
      %s30 = ssub.s32 2048, 2048
      %31 = vsyncadd [#allocation3], %s30
      %s32 = sshll.u32 [#allocation2], 4
      %s33 = int_to_ptr.vmem [resolvable:$true] %s32
      %38 = dma.hbm_to_vmem [thread:$0]  %s3, 2048, %s33, [#allocation3], 64, 64, 4
    $region17: #{forward.1} parent=1 // pred_fallthru
      _
    // Predicated region
    $region18: #{forward.1} parent=1 // pred_check
      _
    $region19: #{forward.1} parent=1 // pred_check_branch
      %40 = sbr.rel (0) target = $region21
    $region20: #{forward.1} parent=1 // pred_region
      _
    $region21: #{forward.1} parent=1 // pred_fallthru
      _
    // Predicated region
    $region22: #{forward.1} parent=1 // pred_check
      _
    $region23: #{forward.1} parent=1 // pred_check_branch
      %42 = sbr.rel (0) target = $region25
    $region24: #{forward.1} parent=1 // pred_region
      %s44 = ssub.s32 1024, 1024
      %45 = vsyncadd [#allocation5], %s44
      %s46 = sshll.u32 [#allocation4], 4
      %s47 = int_to_ptr.vmem [resolvable:$true] %s46
      %52 = dma.hbm_to_vmem [thread:$0]  %s5, 1024, %s47, [#allocation5], 64, 64, 4
    $region25: #{forward.1} parent=1 // pred_fallthru
      _
    // Predicated region
    $region26: #{forward.1} parent=1 // pred_check
      _
    $region27: #{forward.1} parent=1 // pred_check_branch
      %54 = sbr.rel (0) target = $region29
    $region28: #{forward.1} parent=1 // pred_region
      _
    $region29: #{forward.1} parent=1 // pred_fallthru
      _
    // Predicated region
    $region30: #{forward.1} parent=1 // pred_check
      _
    $region31: #{forward.1} parent=1 // pred_check_branch
      %56 = sbr.rel (0) target = $region33
    $region32: #{forward.1} parent=1 // pred_region
      %s58 = ssub.s32 1024, 1024
      %59 = vsyncadd [#allocation5], %s58
      %s60 = sshll.u32 [#allocation6], 4
      %s61 = int_to_ptr.vmem [resolvable:$true] %s60
      %66 = dma.hbm_to_vmem [thread:$0]  %s7, 1024, %s61, [#allocation5], 64, 64, 4
    $region33: #{forward.1} parent=1 // pred_fallthru
      _
    // Predicated region
    $region34: #{forward.1} parent=1 // pred_check
      _
    $region35: #{forward.1} parent=1 // pred_check_branch
      %68 = sbr.rel (0) target = $region37
    $region36: #{forward.1} parent=1 // pred_region
      _
    $region37: #{forward.1} parent=1 // pred_fallthru
      _
    // Predicated region
    $region38: #{forward.1} parent=1 // pred_check
      _
    $region39: #{forward.1} parent=1 // pred_check_branch
      %70 = sbr.rel (0) target = $region41
    $region40: #{forward.1} parent=1 // pred_region
      %s72 = ssub.s32 1024, 1024
      %73 = vsyncadd [#allocation8], %s72
      %s74 = sshll.u32 [#allocation7], 4
      %s75 = int_to_ptr.vmem [resolvable:$true] %s74
      %80 = dma.hbm_to_vmem [thread:$0]  %s9, 1024, %s75, [#allocation8], 64, 64, 4
    $region41: #{forward.1} parent=1 // pred_fallthru
      _
    // Predicated region
    $region42: #{forward.1} parent=1 // pred_check
      _
    $region43: #{forward.1} parent=1 // pred_check_branch
      %82 = sbr.rel (0) target = $region45
    $region44: #{forward.1} parent=1 // pred_region
      _
    $region45: #{forward.1} parent=1 // pred_fallthru
      _
    // Predicated region
    $region46: #{forward.1} parent=1 // pred_check
      _
    $region47: #{forward.1} parent=1 // pred_check_branch
      %84 = sbr.rel (0) target = $region49
    $region48: #{forward.1} parent=1 // pred_region
      _
    $region49: #{forward.1} parent=1 // pred_fallthru
      _
    // Predicated region
    $region50: #{forward.1} parent=1 // pred_check
      _
    $region51: #{forward.1} parent=1 // pred_check_branch
      %86 = sbr.rel (0) target = $region53
    $region52: #{forward.1} parent=1 // pred_region
      _
    $region53: #{forward.1} parent=1 // pred_fallthru
      _
    // Predicated region
    $region54: #{forward.1} parent=1 // pred_check
      _
    $region55: #{forward.1} parent=1 // pred_check_branch
      %88 = sbr.rel (0) target = $region57
    $region56: #{forward.1} parent=1 // pred_region
      %89 = dma.done [#allocation3], 2048
    $region57: #{forward.1} parent=1 // pred_fallthru
      _
    // Predicated region
    $region58: #{forward.1} parent=1 // pred_check
      _
    $region59: #{forward.1} parent=1 // pred_check_branch
      %91 = sbr.rel (0) target = $region61
    $region60: #{forward.1} parent=1 // pred_region
      %92 = dma.done [#allocation5], 1024
    $region61: #{forward.1} parent=1 // pred_fallthru
      _
    // Predicated region
    $region62: #{forward.1} parent=1 // pred_check
      _
    $region63: #{forward.1} parent=1 // pred_check_branch
      %94 = sbr.rel (0) target = $region65
    $region64: #{forward.1} parent=1 // pred_region
      %95 = dma.done [#allocation5], 1024
    $region65: #{forward.1} parent=1 // pred_fallthru
      _
    // Predicated region
    $region66: #{forward.1} parent=1 // pred_check
      _
    $region67: #{forward.1} parent=1 // pred_check_branch
      %97 = sbr.rel (0) target = $region69
    $region68: #{forward.1} parent=1 // pred_region
      %98 = dma.done [#allocation8], 1024
    $region69: #{forward.1} parent=1 // pred_fallthru
      _
    %v100 = vld [vmem:[%s0] sm:$0xff]
    %v101 = vld [vmem:[%s0 + $0x8] sm:$0xff]
    %v102 = vld [vmem:[%s1] sm:$0x1f]
    %v103 = vld [vmem:[%s1 + $0x8] sm:$0x1f]
    %v104 = vld [vmem:[%s2] sm:$0x3]
    %v106 = vlaneseq
    %v107 = vshrl.u32 %v106, 7
    %v108 = vsub.s32 0, %v107
    %v109 = vrot.slane %v104, %v108
    %v110 = vlaneseq
    %v111 = vshrl.u32 %v110, 7
    %v112 = vsub.s32 1, %v111
    %v113 = vrot.slane %v104, %v112
    %vm116 = vcmask 39936
    %v118 = vsel %vm116, %v100, 0
    %v121 = vsel %vm116, %v101, 0
    %vm123 = vcmask 1044480
    %v125 = vsel %vm123, %v102, 0
    %v128 = vsel %vm123, %v103, 0
    %130 = vmatprep.subr.mxu0 %v128
    %131 = vmatpush1.msra.mxu0 %v125
    %132 = vmatprep.subr.mxu0 0.0
    %133 = vmatpush1.msra.mxu0 0.0
    %134 = vmatprep.subr.mxu0 0.0
    %135 = vmatpush1.msra.mxu0 0.0
    %136 = vmatprep.subr.mxu0 0.0
    %137 = vmatpush1.msra.mxu0 0.0
    %138 = vmatprep.subr.mxu0 0.0
    %139 = vmatpush1.msra.mxu0 0.0
    %140 = vmatprep.subr.mxu0 0.0
    %141 = vmatpush1.msra.mxu0 0.0
    %142 = vmatprep.subr.mxu0 0.0
    %143 = vmatpush1.msra.mxu0 0.0
    %144 = vmatprep.subr.mxu0 0.0
    %145 = vmatpush1.msra.mxu0 0.0
    %146 = vmatprep.subr.mxu0 0.0
    %147 = vmatpush1.msra.mxu0 0.0
    %148 = vmatprep.subr.mxu0 0.0
    %149 = vmatpush1.msra.mxu0 0.0
    %150 = vmatprep.subr.mxu0 0.0
    %151 = vmatpush1.msra.mxu0 0.0
    %152 = vmatprep.subr.mxu0 0.0
    %153 = vmatpush1.msra.mxu0 0.0
    %154 = vmatprep.subr.mxu0 0.0
    %155 = vmatpush1.msra.mxu0 0.0
    %156 = vmatprep.subr.mxu0 0.0
    %157 = vmatpush1.msra.mxu0 0.0
    %158 = vmatprep.subr.mxu0 0.0
    %159 = vmatpush1.msra.mxu0 0.0
    %160 = vmatprep.subr.mxu0 0.0
    %161 = vmatpush1.msra.mxu0 0.0
    %162 = vmatprep.subr.mxu0 0.0
    %163 = vmatpush1.msra.mxu0 0.0
    %164 = vmatprep.subr.mxu0 0.0
    %165 = vmatpush1.msra.mxu0 0.0
    %166 = vmatprep.subr.mxu0 0.0
    %167 = vmatpush1.msra.mxu0 0.0
    %168 = vmatprep.subr.mxu0 0.0
    %169 = vmatpush1.msra.mxu0 0.0
    %170 = vmatprep.subr.mxu0 0.0
    %171 = vmatpush1.msra.mxu0 0.0
    %172 = vmatprep.subr.mxu0 0.0
    %173 = vmatpush1.msra.mxu0 0.0
    %174 = vmatprep.subr.mxu0 0.0
    %175 = vmatpush1.msra.mxu0 0.0
    %176 = vmatprep.subr.mxu0 0.0
    %177 = vmatpush1.msra.mxu0 0.0
    %178 = vmatprep.subr.mxu0 0.0
    %179 = vmatpush1.msra.mxu0 0.0
    %180 = vmatprep.subr.mxu0 0.0
    %181 = vmatpush1.msra.mxu0 0.0
    %182 = vmatprep.subr.mxu0 0.0
    %183 = vmatpush1.msra.mxu0 0.0
    %184 = vmatprep.subr.mxu0 0.0
    %185 = vmatpush1.msra.mxu0 0.0
    %186 = vmatprep.subr.mxu0 0.0
    %187 = vmatpush1.msra.mxu0 0.0
    %188 = vmatprep.subr.mxu0 0.0
    %189 = vmatpush1.msra.mxu0 0.0
    %190 = vmatprep.subr.mxu0 0.0
    %191 = vmatpush1.msra.mxu0 0.0
    %192 = vmatprep.subr.mxu0 0.0
    %193 = vmatpush1.msra.mxu0 0.0
    %194 = vmatprep.mubr.f32.mxu0 0.0
    %195 = vmatmul.mubr.f32.gmra.mrb[0].mxu0 %v118
    %v196 = vpop.f32.mrb[0].mxu0
    %v197 = vadd.f32 %v109, %v196
    %v198 = vpop.f32.mrb[0].mxu0
    %v199 = vadd.f32 %v113, %v198
    %200 = vmatprep.mubr.f32.mxu0 0.0
    %201 = vmatmul.mubr.f32.gmra.mrb[0].mxu0 %v121
    %v202 = vpop.f32.mrb[0].mxu0
    %v203 = vadd.f32 %v109, %v202
    %v204 = vpop.f32.mrb[0].mxu0
    %v205 = vadd.f32 %v113, %v204
    %206 = vdwg.mxu0
    %v207 = vmul.f32 %v197, 0.5
    %v208 = vmul.f32 %v199, 0.5
    %v209 = vmul.f32 %v203, 0.5
    %v210 = vmul.f32 %v205, 0.5
    %v211 = vtanh.pop %v207
    %v212 = vtanh.pop %v208
    %v213 = vtanh.pop %v209
    %v214 = vtanh.pop %v210
    %v215 = vmul.f32 %v211, 0.5
    %v216 = vmul.f32 %v212, 0.5
    %v217 = vmul.f32 %v213, 0.5
    %v218 = vmul.f32 %v214, 0.5
    %v219 = vadd.f32 %v215, 0.5
    %v220 = vadd.f32 %v216, 0.5
    %v221 = vadd.f32 %v217, 0.5
    %v222 = vadd.f32 %v218, 0.5
    %v223 = vmul.f32 %v197, %v219
    %v224 = vmul.f32 %v199, %v220
    %v225 = vmul.f32 %v203, %v221
    %v226 = vmul.f32 %v205, %v222
    %v227 = vpack.c.bf16 %v225, %v223
    %v228 = vpack.c.bf16 %v226, %v224
    %v229 = vld [vmem:[#allocation2] sm:$0xf]
    %v230 = vld [vmem:[#allocation2 + $0x4] sm:$0xf]
    %v231 = vld [vmem:[#allocation2 + $0x8] sm:$0xf]
    %v232 = vld [vmem:[#allocation2 + $0xc] sm:$0xf]
    %v233 = vld [vmem:[#allocation2 + $0x10] sm:$0xf]
    %v234 = vld [vmem:[#allocation2 + $0x14] sm:$0xf]
    %v235 = vld [vmem:[#allocation2 + $0x18] sm:$0xf]
    %v236 = vld [vmem:[#allocation2 + $0x1c] sm:$0xf]
    %v237 = vld [vmem:[#allocation2 + $0x20] sm:$0xf]
    %v238 = vld [vmem:[#allocation2 + $0x24] sm:$0xf]
    %v239 = vld [vmem:[#allocation2 + $0x28] sm:$0xf]
    %v240 = vld [vmem:[#allocation2 + $0x2c] sm:$0xf]
    %v241 = vld [vmem:[#allocation2 + $0x30] sm:$0xf]
    %v242 = vld [vmem:[#allocation2 + $0x34] sm:$0xf]
    %v243 = vld [vmem:[#allocation2 + $0x38] sm:$0xf]
    %v244 = vld [vmem:[#allocation2 + $0x3c] sm:$0xf]
    %v245 = vld [vmem:[#allocation2 + $0x40] sm:$0xf]
    %v246 = vld [vmem:[#allocation2 + $0x44] sm:$0xf]
    %v247 = vld [vmem:[#allocation2 + $0x48] sm:$0xf]
    %v248 = vld [vmem:[#allocation2 + $0x4c] sm:$0xf]
    %v249 = vld [vmem:[#allocation2 + $0x50] sm:$0xf]
    %v250 = vld [vmem:[#allocation2 + $0x54] sm:$0xf]
    %v251 = vld [vmem:[#allocation2 + $0x58] sm:$0xf]
    %v252 = vld [vmem:[#allocation2 + $0x5c] sm:$0xf]
    %v253 = vld [vmem:[#allocation2 + $0x60] sm:$0xf]
    %v254 = vld [vmem:[#allocation2 + $0x64] sm:$0xf]
    %v255 = vld [vmem:[#allocation2 + $0x68] sm:$0xf]
    %v256 = vld [vmem:[#allocation2 + $0x6c] sm:$0xf]
    %v257 = vld [vmem:[#allocation2 + $0x70] sm:$0xf]
    %v258 = vld [vmem:[#allocation2 + $0x74] sm:$0xf]
    %v259 = vld [vmem:[#allocation2 + $0x78] sm:$0xf]
    %v260 = vld [vmem:[#allocation2 + $0x7c] sm:$0xf]
    %v261 = vld [vmem:[%s4] sm:$0x1]
    %v263 = vlaneseq
    %v264 = vshrl.u32 %v263, 7
    %v265 = vsub.s32 0, %v264
    %v266 = vrot.slane %v261, %v265
    %v300 = vunpack.c.l.b16 %v229
    %v301 = vunpack.c.l.b16 %v230
    %v302 = vunpack.c.l.b16 %v231
    %v303 = vunpack.c.l.b16 %v232
    %v304 = vunpack.c.l.b16 %v233
    %v305 = vunpack.c.l.b16 %v234
    %v306 = vunpack.c.l.b16 %v235
    %v307 = vunpack.c.l.b16 %v236
    %v308 = vunpack.c.l.b16 %v237
    %v309 = vunpack.c.l.b16 %v238
    %v310 = vunpack.c.l.b16 %v239
    %v311 = vunpack.c.l.b16 %v240
    %v312 = vunpack.c.l.b16 %v241
    %v313 = vunpack.c.l.b16 %v242
    %v314 = vunpack.c.l.b16 %v243
    %v315 = vunpack.c.l.b16 %v244
    %v316 = vunpack.c.l.b16 %v245
    %v317 = vunpack.c.l.b16 %v246
    %v318 = vunpack.c.l.b16 %v247
    %v319 = vunpack.c.l.b16 %v248
    %v320 = vunpack.c.l.b16 %v249
    %v321 = vunpack.c.l.b16 %v250
    %v322 = vunpack.c.l.b16 %v251
    %v323 = vunpack.c.l.b16 %v252
    %v324 = vunpack.c.l.b16 %v253
    %v325 = vunpack.c.l.b16 %v254
    %v326 = vunpack.c.l.b16 %v255
    %v327 = vunpack.c.l.b16 %v256
    %v328 = vunpack.c.l.b16 %v257
    %v329 = vunpack.c.l.b16 %v258
    %v330 = vunpack.c.l.b16 %v259
    %v331 = vunpack.c.l.b16 %v260
    %v332 = vpack.c.b16 %v301, %v300
    %v333 = vpack.c.b16 %v303, %v302
    %v334 = vpack.c.b16 %v305, %v304
    %v335 = vpack.c.b16 %v307, %v306
    %v336 = vpack.c.b16 %v309, %v308
    %v337 = vpack.c.b16 %v311, %v310
    %v338 = vpack.c.b16 %v313, %v312
    %v339 = vpack.c.b16 %v315, %v314
    %v340 = vpack.c.b16 %v317, %v316
    %v341 = vpack.c.b16 %v319, %v318
    %v342 = vpack.c.b16 %v321, %v320
    %v343 = vpack.c.b16 %v323, %v322
    %v344 = vpack.c.b16 %v325, %v324
    %v345 = vpack.c.b16 %v327, %v326
    %v346 = vpack.c.b16 %v329, %v328
    %v347 = vpack.c.b16 %v331, %v330
    %364 = vmatprep.subr.bf16.mxu0 0
    %365 = vmatpush1.bf16.msra.mxu0 %v332
    %366 = vmatprep.subr.bf16.mxu0 0
    %367 = vmatpush1.bf16.msra.mxu0 %v333
    %368 = vmatprep.subr.bf16.mxu0 0
    %369 = vmatpush1.bf16.msra.mxu0 %v334
    %370 = vmatprep.subr.bf16.mxu0 0
    %371 = vmatpush1.bf16.msra.mxu0 %v335
    %372 = vmatprep.subr.bf16.mxu0 0
    %373 = vmatpush1.bf16.msra.mxu0 %v336
    %374 = vmatprep.subr.bf16.mxu0 0
    %375 = vmatpush1.bf16.msra.mxu0 %v337
    %376 = vmatprep.subr.bf16.mxu0 0
    %377 = vmatpush1.bf16.msra.mxu0 %v338
    %378 = vmatprep.subr.bf16.mxu0 0
    %379 = vmatpush1.bf16.msra.mxu0 %v339
    %380 = vmatprep.subr.bf16.mxu0 0
    %381 = vmatpush1.bf16.msra.mxu0 %v340
    %382 = vmatprep.subr.bf16.mxu0 0
    %383 = vmatpush1.bf16.msra.mxu0 %v341
    %384 = vmatprep.subr.bf16.mxu0 0
    %385 = vmatpush1.bf16.msra.mxu0 %v342
    %386 = vmatprep.subr.bf16.mxu0 0
    %387 = vmatpush1.bf16.msra.mxu0 %v343
    %388 = vmatprep.subr.bf16.mxu0 0
    %389 = vmatpush1.bf16.msra.mxu0 %v344
    %390 = vmatprep.subr.bf16.mxu0 0
    %391 = vmatpush1.bf16.msra.mxu0 %v345
    %392 = vmatprep.subr.bf16.mxu0 0
    %393 = vmatpush1.bf16.msra.mxu0 %v346
    %394 = vmatprep.subr.bf16.mxu0 0
    %395 = vmatpush1.bf16.msra.mxu0 %v347
    %396 = vmatprep.mubr.bf16.mxu0 %v228
    %397 = vmatmul.mubr.bf16.gmra.mrb[0].mxu0 %v227
    %v398 = vpop.f32.mrb[0].mxu0
    %v399 = vadd.f32 %v266, %v398
    %v400 = vpop.f32.mrb[0].mxu0
    %v401 = vpop.f32.mrb[0].mxu0
    %v402 = vadd.f32 %v266, %v401
    %v403 = vpop.f32.mrb[0].mxu0
    %404 = vdwg.mxu0
    %v405 = vmul.f32 %v399, 0.5
    %v406 = vmul.f32 %v402, 0.5
    %v407 = vtanh.pop %v405
    %v408 = vtanh.pop %v406
    %v409 = vmul.f32 %v407, 0.5
    %v410 = vmul.f32 %v408, 0.5
    %v411 = vadd.f32 %v409, 0.5
    %v412 = vadd.f32 %v410, 0.5
    %v413 = vmul.f32 %v399, %v411
    %v414 = vmul.f32 %v402, %v412
    %v415 = vpack.c.bf16 %v414, %v413
    %v416 = vld [vmem:[#allocation4] sm:$0xf]
    %v417 = vld [vmem:[#allocation4 + $0x4] sm:$0xf]
    %v418 = vld [vmem:[#allocation4 + $0x8] sm:$0xf]
    %v419 = vld [vmem:[#allocation4 + $0xc] sm:$0xf]
    %v420 = vld [vmem:[#allocation4 + $0x10] sm:$0xf]
    %v421 = vld [vmem:[#allocation4 + $0x14] sm:$0xf]
    %v422 = vld [vmem:[#allocation4 + $0x18] sm:$0xf]
    %v423 = vld [vmem:[#allocation4 + $0x1c] sm:$0xf]
    %v424 = vld [vmem:[#allocation4 + $0x20] sm:$0xf]
    %v425 = vld [vmem:[#allocation4 + $0x24] sm:$0xf]
    %v426 = vld [vmem:[#allocation4 + $0x28] sm:$0xf]
    %v427 = vld [vmem:[#allocation4 + $0x2c] sm:$0xf]
    %v428 = vld [vmem:[#allocation4 + $0x30] sm:$0xf]
    %v429 = vld [vmem:[#allocation4 + $0x34] sm:$0xf]
    %v430 = vld [vmem:[#allocation4 + $0x38] sm:$0xf]
    %v431 = vld [vmem:[#allocation4 + $0x3c] sm:$0xf]
    %v432 = vld [vmem:[%s6] sm:$0x1]
    %v434 = vlaneseq
    %v435 = vshrl.u32 %v434, 7
    %v436 = vsub.s32 0, %v435
    %v437 = vrot.slane %v432, %v436
    %v455 = vunpack.c.l.b16 %v416
    %v456 = vunpack.c.l.b16 %v417
    %v457 = vunpack.c.l.b16 %v418
    %v458 = vunpack.c.l.b16 %v419
    %v459 = vunpack.c.l.b16 %v420
    %v460 = vunpack.c.l.b16 %v421
    %v461 = vunpack.c.l.b16 %v422
    %v462 = vunpack.c.l.b16 %v423
    %v463 = vunpack.c.l.b16 %v424
    %v464 = vunpack.c.l.b16 %v425
    %v465 = vunpack.c.l.b16 %v426
    %v466 = vunpack.c.l.b16 %v427
    %v467 = vunpack.c.l.b16 %v428
    %v468 = vunpack.c.l.b16 %v429
    %v469 = vunpack.c.l.b16 %v430
    %v470 = vunpack.c.l.b16 %v431
    %v471 = vpack.c.b16 %v456, %v455
    %v472 = vpack.c.b16 %v458, %v457
    %v473 = vpack.c.b16 %v460, %v459
    %v474 = vpack.c.b16 %v462, %v461
    %v475 = vpack.c.b16 %v464, %v463
    %v476 = vpack.c.b16 %v466, %v465
    %v477 = vpack.c.b16 %v468, %v467
    %v478 = vpack.c.b16 %v470, %v469
    %487 = vmatprep.subr.bf16.mxu0 0
    %488 = vmatpush1.bf16.msra.mxu0 %v471
    %489 = vmatprep.subr.bf16.mxu0 0
    %490 = vmatpush1.bf16.msra.mxu0 %v472
    %491 = vmatprep.subr.bf16.mxu0 0
    %492 = vmatpush1.bf16.msra.mxu0 %v473
    %493 = vmatprep.subr.bf16.mxu0 0
    %494 = vmatpush1.bf16.msra.mxu0 %v474
    %495 = vmatprep.subr.bf16.mxu0 0
    %496 = vmatpush1.bf16.msra.mxu0 %v475
    %497 = vmatprep.subr.bf16.mxu0 0
    %498 = vmatpush1.bf16.msra.mxu0 %v476
    %499 = vmatprep.subr.bf16.mxu0 0
    %500 = vmatpush1.bf16.msra.mxu0 %v477
    %501 = vmatprep.subr.bf16.mxu0 0
    %502 = vmatpush1.bf16.msra.mxu0 %v478
    %503 = vmatprep.subr.bf16.mxu0 0
    %504 = vmatpush1.bf16.msra.mxu0 0
    %505 = vmatprep.subr.bf16.mxu0 0
    %506 = vmatpush1.bf16.msra.mxu0 0
    %507 = vmatprep.subr.bf16.mxu0 0
    %508 = vmatpush1.bf16.msra.mxu0 0
    %509 = vmatprep.subr.bf16.mxu0 0
    %510 = vmatpush1.bf16.msra.mxu0 0
    %511 = vmatprep.subr.bf16.mxu0 0
    %512 = vmatpush1.bf16.msra.mxu0 0
    %513 = vmatprep.subr.bf16.mxu0 0
    %514 = vmatpush1.bf16.msra.mxu0 0
    %515 = vmatprep.subr.bf16.mxu0 0
    %516 = vmatpush1.bf16.msra.mxu0 0
    %517 = vmatprep.subr.bf16.mxu0 0
    %518 = vmatpush1.bf16.msra.mxu0 0
    %519 = vmatprep.mubr.bf16.mxu0 0
    %520 = vmatmul.mubr.bf16.gmra.mrb[0].mxu0 %v415
    %v521 = vpop.f32.mrb[0].mxu0
    %v522 = vadd.f32 %v437, %v521
    %v523 = vpop.f32.mrb[0].mxu0
    %v524 = vpop.f32.mrb[0].mxu0
    %v525 = vadd.f32 %v437, %v524
    %v526 = vpop.f32.mrb[0].mxu0
    %527 = vdwg.mxu0
    %v528 = vmul.f32 %v522, 0.5
    %v529 = vmul.f32 %v525, 0.5
    %v530 = vtanh.pop %v528
    %v531 = vtanh.pop %v529
    %v532 = vmul.f32 %v530, 0.5
    %v533 = vmul.f32 %v531, 0.5
    %v534 = vadd.f32 %v532, 0.5
    %v535 = vadd.f32 %v533, 0.5
    %v536 = vmul.f32 %v522, %v534
    %v537 = vmul.f32 %v525, %v535
    %v538 = vpack.c.bf16 %v537, %v536
    %v539 = vld [vmem:[#allocation6] sm:$0xf]
    %v540 = vld [vmem:[#allocation6 + $0x4] sm:$0xf]
    %v541 = vld [vmem:[#allocation6 + $0x8] sm:$0xf]
    %v542 = vld [vmem:[#allocation6 + $0xc] sm:$0xf]
    %v543 = vld [vmem:[#allocation6 + $0x10] sm:$0xf]
    %v544 = vld [vmem:[#allocation6 + $0x14] sm:$0xf]
    %v545 = vld [vmem:[#allocation6 + $0x18] sm:$0xf]
    %v546 = vld [vmem:[#allocation6 + $0x1c] sm:$0xf]
    %v547 = vld [vmem:[#allocation6 + $0x20] sm:$0xf]
    %v548 = vld [vmem:[#allocation6 + $0x24] sm:$0xf]
    %v549 = vld [vmem:[#allocation6 + $0x28] sm:$0xf]
    %v550 = vld [vmem:[#allocation6 + $0x2c] sm:$0xf]
    %v551 = vld [vmem:[#allocation6 + $0x30] sm:$0xf]
    %v552 = vld [vmem:[#allocation6 + $0x34] sm:$0xf]
    %v553 = vld [vmem:[#allocation6 + $0x38] sm:$0xf]
    %v554 = vld [vmem:[#allocation6 + $0x3c] sm:$0xf]
    %v555 = vld [vmem:[%s8] sm:$0x1]
    %v557 = vlaneseq
    %v558 = vshrl.u32 %v557, 7
    %v559 = vsub.s32 0, %v558
    %v560 = vrot.slane %v555, %v559
    %v578 = vunpack.c.l.b16 %v539
    %v579 = vunpack.c.l.b16 %v540
    %v580 = vunpack.c.l.b16 %v541
    %v581 = vunpack.c.l.b16 %v542
    %v582 = vunpack.c.l.b16 %v543
    %v583 = vunpack.c.l.b16 %v544
    %v584 = vunpack.c.l.b16 %v545
    %v585 = vunpack.c.l.b16 %v546
    %v586 = vunpack.c.l.b16 %v547
    %v587 = vunpack.c.l.b16 %v548
    %v588 = vunpack.c.l.b16 %v549
    %v589 = vunpack.c.l.b16 %v550
    %v590 = vunpack.c.l.b16 %v551
    %v591 = vunpack.c.l.b16 %v552
    %v592 = vunpack.c.l.b16 %v553
    %v593 = vunpack.c.l.b16 %v554
    %v594 = vpack.c.b16 %v579, %v578
    %v595 = vpack.c.b16 %v581, %v580
    %v596 = vpack.c.b16 %v583, %v582
    %v597 = vpack.c.b16 %v585, %v584
    %v598 = vpack.c.b16 %v587, %v586
    %v599 = vpack.c.b16 %v589, %v588
    %v600 = vpack.c.b16 %v591, %v590
    %v601 = vpack.c.b16 %v593, %v592
    %610 = vmatprep.subr.bf16.mxu0 0
    %611 = vmatpush1.bf16.msra.mxu0 %v594
    %612 = vmatprep.subr.bf16.mxu0 0
    %613 = vmatpush1.bf16.msra.mxu0 %v595
    %614 = vmatprep.subr.bf16.mxu0 0
    %615 = vmatpush1.bf16.msra.mxu0 %v596
    %616 = vmatprep.subr.bf16.mxu0 0
    %617 = vmatpush1.bf16.msra.mxu0 %v597
    %618 = vmatprep.subr.bf16.mxu0 0
    %619 = vmatpush1.bf16.msra.mxu0 %v598
    %620 = vmatprep.subr.bf16.mxu0 0
    %621 = vmatpush1.bf16.msra.mxu0 %v599
    %622 = vmatprep.subr.bf16.mxu0 0
    %623 = vmatpush1.bf16.msra.mxu0 %v600
    %624 = vmatprep.subr.bf16.mxu0 0
    %625 = vmatpush1.bf16.msra.mxu0 %v601
    %626 = vmatprep.subr.bf16.mxu0 0
    %627 = vmatpush1.bf16.msra.mxu0 0
    %628 = vmatprep.subr.bf16.mxu0 0
    %629 = vmatpush1.bf16.msra.mxu0 0
    %630 = vmatprep.subr.bf16.mxu0 0
    %631 = vmatpush1.bf16.msra.mxu0 0
    %632 = vmatprep.subr.bf16.mxu0 0
    %633 = vmatpush1.bf16.msra.mxu0 0
    %634 = vmatprep.subr.bf16.mxu0 0
    %635 = vmatpush1.bf16.msra.mxu0 0
    %636 = vmatprep.subr.bf16.mxu0 0
    %637 = vmatpush1.bf16.msra.mxu0 0
    %638 = vmatprep.subr.bf16.mxu0 0
    %639 = vmatpush1.bf16.msra.mxu0 0
    %640 = vmatprep.subr.bf16.mxu0 0
    %641 = vmatpush1.bf16.msra.mxu0 0
    %642 = vmatprep.mubr.bf16.mxu0 0
    %643 = vmatmul.mubr.bf16.gmra.mrb[0].mxu0 %v538
    %v644 = vpop.f32.mrb[0].mxu0
    %v645 = vadd.f32 %v560, %v644
    %v646 = vpop.f32.mrb[0].mxu0
    %v647 = vpop.f32.mrb[0].mxu0
    %v648 = vadd.f32 %v560, %v647
    %v649 = vpop.f32.mrb[0].mxu0
    %650 = vdwg.mxu0
    %v651 = vmul.f32 %v645, 0.5
    %v652 = vmul.f32 %v648, 0.5
    %v653 = vtanh.pop %v651
    %v654 = vtanh.pop %v652
    %v655 = vmul.f32 %v653, 0.5
    %v656 = vmul.f32 %v654, 0.5
    %v657 = vadd.f32 %v655, 0.5
    %v658 = vadd.f32 %v656, 0.5
    %v659 = vmul.f32 %v645, %v657
    %v660 = vmul.f32 %v648, %v658
    %v661 = vpack.c.bf16 %v660, %v659
    %v662 = vld [vmem:[#allocation7] sm:$0xf]
    %v663 = vld [vmem:[#allocation7 + $0x4] sm:$0xf]
    %v664 = vld [vmem:[#allocation7 + $0x8] sm:$0xf]
    %v665 = vld [vmem:[#allocation7 + $0xc] sm:$0xf]
    %v666 = vld [vmem:[#allocation7 + $0x10] sm:$0xf]
    %v667 = vld [vmem:[#allocation7 + $0x14] sm:$0xf]
    %v668 = vld [vmem:[#allocation7 + $0x18] sm:$0xf]
    %v669 = vld [vmem:[#allocation7 + $0x1c] sm:$0xf]
    %v670 = vld [vmem:[#allocation7 + $0x20] sm:$0xf]
    %v671 = vld [vmem:[#allocation7 + $0x24] sm:$0xf]
    %v672 = vld [vmem:[#allocation7 + $0x28] sm:$0xf]
    %v673 = vld [vmem:[#allocation7 + $0x2c] sm:$0xf]
    %v674 = vld [vmem:[#allocation7 + $0x30] sm:$0xf]
    %v675 = vld [vmem:[#allocation7 + $0x34] sm:$0xf]
    %v676 = vld [vmem:[#allocation7 + $0x38] sm:$0xf]
    %v677 = vld [vmem:[#allocation7 + $0x3c] sm:$0xf]
    %v678 = vld [vmem:[%s10] sm:$0x1]
    %v680 = vlaneseq
    %v681 = vshrl.u32 %v680, 7
    %v682 = vsub.s32 0, %v681
    %v683 = vrot.slane %v678, %v682
    %v701 = vunpack.c.l.b16 %v662
    %v702 = vunpack.c.l.b16 %v663
    %v703 = vunpack.c.l.b16 %v664
    %v704 = vunpack.c.l.b16 %v665
    %v705 = vunpack.c.l.b16 %v666
    %v706 = vunpack.c.l.b16 %v667
    %v707 = vunpack.c.l.b16 %v668
    %v708 = vunpack.c.l.b16 %v669
    %v709 = vunpack.c.l.b16 %v670
    %v710 = vunpack.c.l.b16 %v671
    %v711 = vunpack.c.l.b16 %v672
    %v712 = vunpack.c.l.b16 %v673
    %v713 = vunpack.c.l.b16 %v674
    %v714 = vunpack.c.l.b16 %v675
    %v715 = vunpack.c.l.b16 %v676
    %v716 = vunpack.c.l.b16 %v677
    %v717 = vpack.c.b16 %v702, %v701
    %v718 = vpack.c.b16 %v704, %v703
    %v719 = vpack.c.b16 %v706, %v705
    %v720 = vpack.c.b16 %v708, %v707
    %v721 = vpack.c.b16 %v710, %v709
    %v722 = vpack.c.b16 %v712, %v711
    %v723 = vpack.c.b16 %v714, %v713
    %v724 = vpack.c.b16 %v716, %v715
    %733 = vmatprep.subr.bf16.mxu0 0
    %734 = vmatpush1.bf16.msra.mxu0 %v717
    %735 = vmatprep.subr.bf16.mxu0 0
    %736 = vmatpush1.bf16.msra.mxu0 %v718
    %737 = vmatprep.subr.bf16.mxu0 0
    %738 = vmatpush1.bf16.msra.mxu0 %v719
    %739 = vmatprep.subr.bf16.mxu0 0
    %740 = vmatpush1.bf16.msra.mxu0 %v720
    %741 = vmatprep.subr.bf16.mxu0 0
    %742 = vmatpush1.bf16.msra.mxu0 %v721
    %743 = vmatprep.subr.bf16.mxu0 0
    %744 = vmatpush1.bf16.msra.mxu0 %v722
    %745 = vmatprep.subr.bf16.mxu0 0
    %746 = vmatpush1.bf16.msra.mxu0 %v723
    %747 = vmatprep.subr.bf16.mxu0 0
    %748 = vmatpush1.bf16.msra.mxu0 %v724
    %749 = vmatprep.subr.bf16.mxu0 0
    %750 = vmatpush1.bf16.msra.mxu0 0
    %751 = vmatprep.subr.bf16.mxu0 0
    %752 = vmatpush1.bf16.msra.mxu0 0
    %753 = vmatprep.subr.bf16.mxu0 0
    %754 = vmatpush1.bf16.msra.mxu0 0
    %755 = vmatprep.subr.bf16.mxu0 0
    %756 = vmatpush1.bf16.msra.mxu0 0
    %757 = vmatprep.subr.bf16.mxu0 0
    %758 = vmatpush1.bf16.msra.mxu0 0
    %759 = vmatprep.subr.bf16.mxu0 0
    %760 = vmatpush1.bf16.msra.mxu0 0
    %761 = vmatprep.subr.bf16.mxu0 0
    %762 = vmatpush1.bf16.msra.mxu0 0
    %763 = vmatprep.subr.bf16.mxu0 0
    %764 = vmatpush1.bf16.msra.mxu0 0
    %765 = vmatprep.mubr.bf16.mxu0 0
    %766 = vmatmul.mubr.bf16.gmra.mrb[0].mxu0 %v661
    %v767 = vpop.f32.mrb[0].mxu0
    %v768 = vadd.f32 %v683, %v767
    %v769 = vpop.f32.mrb[0].mxu0
    %v770 = vpop.f32.mrb[0].mxu0
    %v771 = vadd.f32 %v683, %v770
    %v772 = vpop.f32.mrb[0].mxu0
    %773 = vdwg.mxu0
    %v774 = vmul.f32 %v768, 0.5
    %v775 = vmul.f32 %v771, 0.5
    %v776 = vtanh.pop %v774
    %v777 = vtanh.pop %v775
    %v778 = vmul.f32 %v776, 0.5
    %v779 = vmul.f32 %v777, 0.5
    %v780 = vadd.f32 %v778, 0.5
    %v781 = vadd.f32 %v779, 0.5
    %v782 = vmul.f32 %v768, %v780
    %v783 = vmul.f32 %v771, %v781
    %v784 = vpack.c.bf16 %v783, %v782
    %v785 = vld [vmem:[%s11] sm:$0xf]
    %v786 = vld [vmem:[%s11 + $0x4] sm:$0xf]
    %v787 = vld [vmem:[%s11 + $0x8] sm:$0xf]
    %v788 = vld [vmem:[%s11 + $0xc] sm:$0xf]
    %v789 = vld [vmem:[%s11 + $0x10] sm:$0xf]
    %v790 = vld [vmem:[%s11 + $0x14] sm:$0xf]
    %v791 = vld [vmem:[%s11 + $0x18] sm:$0xf]
    %v792 = vld [vmem:[%s11 + $0x1c] sm:$0xf]
    %v793 = vld [vmem:[%s11 + $0x20] sm:$0xf]
    %v794 = vld [vmem:[%s11 + $0x24] sm:$0xf]
    %v795 = vld [vmem:[%s11 + $0x28] sm:$0xf]
    %v796 = vld [vmem:[%s11 + $0x2c] sm:$0xf]
    %v797 = vld [vmem:[%s11 + $0x30] sm:$0xf]
    %v798 = vld [vmem:[%s11 + $0x34] sm:$0xf]
    %v799 = vld [vmem:[%s11 + $0x38] sm:$0xf]
    %v800 = vld [vmem:[%s11 + $0x3c] sm:$0xf]
    %v801 = vld [vmem:[%s12] sm:$0x1]
    %v803 = vlaneseq
    %v804 = vshrl.u32 %v803, 7
    %v805 = vsub.s32 0, %v804
    %v806 = vrot.slane %v801, %v805
    %v824 = vunpack.c.l.b16 %v785
    %v825 = vunpack.c.l.b16 %v786
    %v826 = vunpack.c.l.b16 %v787
    %v827 = vunpack.c.l.b16 %v788
    %v828 = vunpack.c.l.b16 %v789
    %v829 = vunpack.c.l.b16 %v790
    %v830 = vunpack.c.l.b16 %v791
    %v831 = vunpack.c.l.b16 %v792
    %v832 = vunpack.c.l.b16 %v793
    %v833 = vunpack.c.l.b16 %v794
    %v834 = vunpack.c.l.b16 %v795
    %v835 = vunpack.c.l.b16 %v796
    %v836 = vunpack.c.l.b16 %v797
    %v837 = vunpack.c.l.b16 %v798
    %v838 = vunpack.c.l.b16 %v799
    %v839 = vunpack.c.l.b16 %v800
    %v840 = vpack.c.b16 %v825, %v824
    %v841 = vpack.c.b16 %v827, %v826
    %v842 = vpack.c.b16 %v829, %v828
    %v843 = vpack.c.b16 %v831, %v830
    %v844 = vpack.c.b16 %v833, %v832
    %v845 = vpack.c.b16 %v835, %v834
    %v846 = vpack.c.b16 %v837, %v836
    %v847 = vpack.c.b16 %v839, %v838
    %856 = vmatprep.subr.bf16.mxu0 0
    %857 = vmatpush1.bf16.msra.mxu0 %v840
    %858 = vmatprep.subr.bf16.mxu0 0
    %859 = vmatpush1.bf16.msra.mxu0 %v841
    %860 = vmatprep.subr.bf16.mxu0 0
    %861 = vmatpush1.bf16.msra.mxu0 %v842
    %862 = vmatprep.subr.bf16.mxu0 0
    %863 = vmatpush1.bf16.msra.mxu0 %v843
    %864 = vmatprep.subr.bf16.mxu0 0
    %865 = vmatpush1.bf16.msra.mxu0 %v844
    %866 = vmatprep.subr.bf16.mxu0 0
    %867 = vmatpush1.bf16.msra.mxu0 %v845
    %868 = vmatprep.subr.bf16.mxu0 0
    %869 = vmatpush1.bf16.msra.mxu0 %v846
    %870 = vmatprep.subr.bf16.mxu0 0
    %871 = vmatpush1.bf16.msra.mxu0 %v847
    %872 = vmatprep.subr.bf16.mxu0 0
    %873 = vmatpush1.bf16.msra.mxu0 0
    %874 = vmatprep.subr.bf16.mxu0 0
    %875 = vmatpush1.bf16.msra.mxu0 0
    %876 = vmatprep.subr.bf16.mxu0 0
    %877 = vmatpush1.bf16.msra.mxu0 0
    %878 = vmatprep.subr.bf16.mxu0 0
    %879 = vmatpush1.bf16.msra.mxu0 0
    %880 = vmatprep.subr.bf16.mxu0 0
    %881 = vmatpush1.bf16.msra.mxu0 0
    %882 = vmatprep.subr.bf16.mxu0 0
    %883 = vmatpush1.bf16.msra.mxu0 0
    %884 = vmatprep.subr.bf16.mxu0 0
    %885 = vmatpush1.bf16.msra.mxu0 0
    %886 = vmatprep.subr.bf16.mxu0 0
    %887 = vmatpush1.bf16.msra.mxu0 0
    %888 = vmatprep.mubr.bf16.mxu0 0
    %889 = vmatmul.mubr.bf16.gmra.mrb[0].mxu0 %v784
    %v890 = vpop.f32.mrb[0].mxu0
    %v891 = vadd.f32 %v806, %v890
    %v892 = vpop.f32.mrb[0].mxu0
    %v893 = vpop.f32.mrb[0].mxu0
    %v894 = vadd.f32 %v806, %v893
    %v895 = vpop.f32.mrb[0].mxu0
    %896 = vdwg.mxu0
    %v897 = vpack.c.bf16 %v894, %v891
    %v899 = vunpack.c.l.b16 %v897
    %v900 = vunpack.c.h.b16 %v897
    %v901 = vpack.c.b16 %v899, %v899
    %v902 = vpack.c.b16 %v900, %v900
    %905 = vst [vmem:[%s13] sm:$0xf] %v901
    %906 = vst [vmem:[%s13 + $0x4] sm:$0xf] %v902
    // Predicated region
    $region70: #{forward.1} parent=1 // pred_check
      _
    $region71: #{forward.1} parent=1 // pred_check_branch
      %908 = sbr.rel (0) target = $region73
    $region72: #{forward.1} parent=1 // pred_region
      _
    $region73: #{forward.1} parent=1 // pred_fallthru
      _
    // Predicated region
    $region74: #{forward.1} parent=1 // pred_check
      _
    $region75: #{forward.1} parent=1 // pred_check_branch
      %910 = sbr.rel (0) target = $region77
    $region76: #{forward.1} parent=1 // pred_region
      _
    $region77: #{forward.1} parent=1 // pred_fallthru
      _
    %911 = vsyncpa [#allocation3], 1
    %912 = vsyncpa [#allocation5], 1
    %913 = vsyncpa [#allocation8], 1

</llo_original>
